<compile_context>
chip_gen: v5e
topology: v5e:2x2
jax: 0.10.0
libtpu: 0.0.40
codegen_flags: <defaults>
</compile_context>

<pallas_src>
import functools

import jax
import jax.numpy as jnp
from jax.experimental import pallas as pl
from jax.experimental.pallas import tpu as pltpu


def _nn_attention_kernel(tok_ref,     # VMEM (TB, L)      int32 token ids
                         len_ref,     # VMEM (TB, 1)      int32 lengths
                         rexp_ref,    # VMEM (L, L*V)     f32   chunk-repeat expansion
                         vidx_ref,    # VMEM (1, L*V)     f32   within-chunk vocab index
                         temb_ref,    # VMEM (L*V, L*D)   f32   block-diag embedding table
                         wexp_ref,    # VMEM (L*D, L)     f32   block-diag attention vector
                         pexp_ref,    # VMEM (L, L*D)     f32   ones expansion for probs
                         wstk_ref,    # VMEM (L*D, C)     f32   lin_w tiled L times
                         bias_ref,    # VMEM (1, C)       f32   linear bias
                         logits_ref,  # VMEM (TB, C)      f32
                         scores_ref): # VMEM (TB, L)      f32
    tb, seq_l = tok_ref.shape

    # ---- Fused embedding gather on the MXU (one-hot matmul, no HBM slab) ----
    tok_f = tok_ref[...].astype(jnp.float32)                      # (TB, L) exact ints
    # tok_rep[b, l*V + v] = tok[b, l]  (built with a tiny MXU matmul, no reshapes)
    tok_rep = jnp.dot(tok_f, rexp_ref[...],
                      preferred_element_type=jnp.float32)         # (TB, L*V)
    oh = (tok_rep == vidx_ref[...]).astype(jnp.float32)           # per-chunk one-hot
    # Lane-dense embedding slab: e[b, l*D + d] = emb_table[tok[b, l], d]
    e = jnp.dot(oh, temb_ref[...],
                preferred_element_type=jnp.float32)               # (TB, L*D)

    # ---- Attention energies: (TB, L*D) @ (L*D, L) block-diag -> (TB, L) ----
    s = jnp.tanh(jnp.dot(e, wexp_ref[...],
                         preferred_element_type=jnp.float32))

    # ---- Fused masked softmax over the sequence (lane) axis ----
    pos = jax.lax.broadcasted_iota(jnp.int32, (tb, seq_l), 1)
    valid = pos < len_ref[...]                                    # (TB, L)
    m = jnp.max(s, axis=-1, keepdims=True)                        # s in [-1, 1]
    p = jnp.where(valid, jnp.exp(s - m), 0.0)
    denom = jnp.sum(p, axis=-1, keepdims=True)
    # Exact divide (review: approx reciprocal removed).  max() guards length-0 rows
    # (they yield zero scores / bias-only logits instead of NaN).
    mp = p / jnp.maximum(denom, 1e-30)
    scores_ref[...] = mp                                          # lane-dense (TB, L)

    # ---- Weighted pooling + classifier, all on the MXU ----
    # p_expand[b, l*D + d] = mp[b, l]
    p_expand = jnp.dot(mp, pexp_ref[...],
                       preferred_element_type=jnp.float32)        # (TB, L*D)
    logits_ref[...] = (jnp.dot(e * p_expand, wstk_ref[...],
                               preferred_element_type=jnp.float32)
                       + bias_ref[...])


@functools.partial(jax.jit, static_argnames=("block_b",))
def nn_attention_forward(x, lengths, emb_table, attn_w, lin_w, lin_b, *, block_b=2048):
    """x: (B, L) int32 token ids; lengths: (B,) int32.

    emb_table: (V, D); attn_w: (1, D); lin_w: (D, C) pre-transposed Linear weight;
    lin_b: (1, C).  Returns (logits (B, C), scores (B, L)).
    """
    B, L = x.shape
    V, D = emb_table.shape
    C = lin_w.shape[1]

    # Batch tile: large (amortizes per-step overhead), multiple of 8 sublanes,
    # capped so the grid has >= 2 steps (v7x: both TensorCores get work).
    TB = max(8, (min(block_b, B) + 7) // 8 * 8)
    half = max(8, (pl.cdiv(B, 2) + 7) // 8 * 8)
    TB = min(TB, half)
    Bp = pl.cdiv(B, TB) * TB

    tok = x.astype(jnp.int32)
    len_col = lengths.reshape(B, 1).astype(jnp.int32)
    if Bp != B:
        # Only tiny token/length arrays are padded now (no (B, L*D) slab pass).
        tok = jnp.pad(tok, ((0, Bp - B), (0, 0)))
        len_col = jnp.pad(len_col, ((0, Bp - B), (0, 0)), constant_values=1)

    f32 = jnp.float32
    table = emb_table.astype(f32)
    eye_l = jnp.eye(L, dtype=f32)
    # Tiny constants (built once under jit, VMEM-resident via constant index_map):
    rexp = jnp.repeat(eye_l, V, axis=1)                                  # (L, L*V)
    vidx = jnp.tile(jnp.arange(V, dtype=f32), L).reshape(1, L * V)       # (1, L*V)
    temb = (eye_l[:, None, :, None] * table[None, :, None, :]).reshape(L * V, L * D)
    wexp = (eye_l[:, None, :] * attn_w.reshape(1, D, 1).astype(f32)).reshape(L * D, L)
    pexp = jnp.repeat(eye_l, D, axis=1)                                  # (L, L*D)
    wstk = jnp.tile(lin_w.astype(f32), (L, 1))                           # (L*D, C)
    bias = lin_b.reshape(1, C).astype(f32)

    grid_spec = pltpu.PrefetchScalarGridSpec(
        num_scalar_prefetch=0,
        grid=(Bp // TB,),
        in_specs=[
            pl.BlockSpec((TB, L), lambda b: (b, 0)),        # token ids
            pl.BlockSpec((TB, 1), lambda b: (b, 0)),        # lengths
            pl.BlockSpec((L, L * V), lambda b: (0, 0)),     # rexp (constant)
            pl.BlockSpec((1, L * V), lambda b: (0, 0)),     # vidx (constant)
            pl.BlockSpec((L * V, L * D), lambda b: (0, 0)), # expanded emb table
            pl.BlockSpec((L * D, L), lambda b: (0, 0)),     # expanded attention vec
            pl.BlockSpec((L, L * D), lambda b: (0, 0)),     # prob expansion
            pl.BlockSpec((L * D, C), lambda b: (0, 0)),     # stacked linear weight
            pl.BlockSpec((1, C), lambda b: (0, 0)),         # linear bias
        ],
        out_specs=[
            pl.BlockSpec((TB, C), lambda b: (b, 0)),        # logits
            pl.BlockSpec((TB, L), lambda b: (b, 0)),        # attention scores
        ],
    )

    logits, scores = pl.pallas_call(
        _nn_attention_kernel,
        out_shape=(
            jax.ShapeDtypeStruct((Bp, C), f32),
            jax.ShapeDtypeStruct((Bp, L), f32),
        ),
        grid_spec=grid_spec,
        compiler_params=pltpu.CompilerParams(
            dimension_semantics=("parallel",)),
    )(tok, len_col, rexp, vidx, temb, wexp, pexp, wstk, bias)

    return logits[:B], scores[:B]


def _reference_forward(x, lengths, emb_table, attn_w, lin_w, lin_b):
    """Pure-JAX reference mirroring the PyTorch module (softmax -> mask -> renorm)."""
    e = jnp.take(emb_table, x, axis=0).astype(jnp.float32)        # (B, L, D)
    s = jnp.tanh(jnp.einsum("bld,d->bl", e, attn_w.reshape(-1)))  # (B, L)
    p = jax.nn.softmax(s, axis=-1)
    L = x.shape[1]
    mask = (jnp.arange(L)[None, :] < lengths[:, None]).astype(jnp.float32)
    mp = p * mask
    mp = mp / jnp.sum(mp, axis=-1, keepdims=True)
    rep = jnp.einsum("bld,bl->bd", e, mp)                         # (B, D)
    logits = rep @ lin_w + lin_b                                  # (B, C)
    return logits, mp


if __name__ == "__main__":
    # Small deterministic configuration.
    B, L, D, C, VOCAB = 16, 8, 32, 4, 50

    key = jax.random.PRNGKey(0)
    k_emb, k_attn, k_lw, k_lb, k_x, k_len = jax.random.split(key, 6)

    # "Pretrained" embedding matrix (frozen in the PyTorch module).
    emb_table = (0.1 * jax.random.normal(k_emb, (VOCAB, D))).astype(jnp.float32)
    # SelfAttention weight vector, kept as (1, D).
    attn_w = (0.05 * jax.random.normal(k_attn, (1, D))).astype(jnp.float32)
    # nn.Linear(D, C): weight stored pre-transposed as (D, C), bias as (1, C).
    lin_w = (0.1 * jax.random.normal(k_lw, (D, C))).astype(jnp.float32)
    lin_b = (0.1 * jax.random.normal(k_lb, (1, C))).astype(jnp.float32)

    # Token ids and true sequence lengths (>= 1).
    x = jax.random.randint(k_x, (B, L), 0, VOCAB, dtype=jnp.int32)
    lengths = jax.random.randint(k_len, (B,), 1, L + 1, dtype=jnp.int32)

    # block_b=8 so this tiny demo runs 2 grid steps; real batches use the 2048 default.
    logits, scores = nn_attention_forward(x, lengths, emb_table, attn_w,
                                          lin_w, lin_b, block_b=8)
    jax.block_until_ready((logits, scores))

    ref_logits, ref_scores = _reference_forward(x, lengths, emb_table,
                                                attn_w, lin_w, lin_b)
    assert logits.shape == (B, C) and scores.shape == (B, L)
    # Exact softmax divide restored (approx reciprocal removed) -> tighter tolerance.
    assert jnp.allclose(logits, ref_logits, atol=1e-3, rtol=1e-3)
    assert jnp.allclose(scores, ref_scores, atol=1e-3, rtol=1e-3)

    print("KERNEL_OK")
</pallas_src>

<mosaic_0001>
module attributes {stable_mosaic.version = 11 : i64} {
  func.func @_nn_attention_kernel(%arg0: i32, %arg1: memref<8x8xi32, #tpu.memory_space<vmem>>, %arg2: memref<8x1xi32, #tpu.memory_space<vmem>>, %arg3: memref<8x400xf32, #tpu.memory_space<vmem>>, %arg4: memref<1x400xf32, #tpu.memory_space<vmem>>, %arg5: memref<400x256xf32, #tpu.memory_space<vmem>>, %arg6: memref<256x8xf32, #tpu.memory_space<vmem>>, %arg7: memref<8x256xf32, #tpu.memory_space<vmem>>, %arg8: memref<256x4xf32, #tpu.memory_space<vmem>>, %arg9: memref<1x4xf32, #tpu.memory_space<vmem>>, %arg10: memref<8x4xf32, #tpu.memory_space<vmem>>, %arg11: memref<8x8xf32, #tpu.memory_space<vmem>>) attributes {dimension_semantics = [#tpu.dimension_semantics<parallel>], iteration_bounds = array<i64: 2>, scalar_prefetch = 0 : i64, scratch_operands = 0 : i64, tpu.core_type = #tpu.core_type<tc>, window_params = [{transform_indices = @transform_0, window_bounds = array<i64: 8, 8>}, {transform_indices = @transform_1, window_bounds = array<i64: 8, 1>}, {pipeline_mode = #tpu.pipeline_mode<synchronous>, transform_indices = @transform_2, window_bounds = array<i64: 8, 400>}, {pipeline_mode = #tpu.pipeline_mode<synchronous>, transform_indices = @transform_3, window_bounds = array<i64: 1, 400>}, {pipeline_mode = #tpu.pipeline_mode<synchronous>, transform_indices = @transform_4, window_bounds = array<i64: 400, 256>}, {pipeline_mode = #tpu.pipeline_mode<synchronous>, transform_indices = @transform_5, window_bounds = array<i64: 256, 8>}, {pipeline_mode = #tpu.pipeline_mode<synchronous>, transform_indices = @transform_6, window_bounds = array<i64: 8, 256>}, {pipeline_mode = #tpu.pipeline_mode<synchronous>, transform_indices = @transform_7, window_bounds = array<i64: 256, 4>}, {pipeline_mode = #tpu.pipeline_mode<synchronous>, transform_indices = @transform_8, window_bounds = array<i64: 1, 4>}, {transform_indices = @transform_9, window_bounds = array<i64: 8, 4>}, {transform_indices = @transform_10, window_bounds = array<i64: 8, 8>}]} {
    %c0 = arith.constant 0 : index
    %c0_0 = arith.constant 0 : index
    %0 = vector.load %arg1[%c0, %c0_0] : memref<8x8xi32, #tpu.memory_space<vmem>>, vector<8x8xi32>
    %1 = arith.sitofp %0 : vector<8x8xi32> to vector<8x8xf32>
    %c0_1 = arith.constant 0 : index
    %c0_2 = arith.constant 0 : index
    %2 = vector.load %arg3[%c0_1, %c0_2] : memref<8x400xf32, #tpu.memory_space<vmem>>, vector<8x400xf32>
    %cst = arith.constant dense<0.000000e+00> : vector<8x400xf32>
    %3 = tpu.matmul %1, %2, %cst {dimension_numbers = #tpu.dot_dimension_numbers<[1], [0], [0], [1], [0, 0, 1, 1], [], []>} : vector<8x8xf32>, vector<8x400xf32>, vector<8x400xf32> -> vector<8x400xf32>
    %c0_3 = arith.constant 0 : index
    %c0_4 = arith.constant 0 : index
    %4 = vector.load %arg4[%c0_3, %c0_4] : memref<1x400xf32, #tpu.memory_space<vmem>>, vector<1x400xf32>
    %5 = vector.broadcast %4 : vector<1x400xf32> to vector<8x400xf32>
    %6 = arith.cmpf oeq, %3, %5 : vector<8x400xf32>
    %7 = arith.extui %6 : vector<8x400xi1> to vector<8x400xi32>
    %8 = arith.sitofp %7 : vector<8x400xi32> to vector<8x400xf32>
    %c0_5 = arith.constant 0 : index
    %c0_6 = arith.constant 0 : index
    %9 = vector.load %arg5[%c0_5, %c0_6] : memref<400x256xf32, #tpu.memory_space<vmem>>, vector<400x256xf32>
    %cst_7 = arith.constant dense<0.000000e+00> : vector<8x256xf32>
    %10 = tpu.matmul %8, %9, %cst_7 {dimension_numbers = #tpu.dot_dimension_numbers<[1], [0], [0], [1], [0, 0, 1, 1], [], []>} : vector<8x400xf32>, vector<400x256xf32>, vector<8x256xf32> -> vector<8x256xf32>
    %c0_8 = arith.constant 0 : index
    %c0_9 = arith.constant 0 : index
    %11 = vector.load %arg6[%c0_8, %c0_9] : memref<256x8xf32, #tpu.memory_space<vmem>>, vector<256x8xf32>
    %cst_10 = arith.constant dense<0.000000e+00> : vector<8x8xf32>
    %12 = tpu.matmul %10, %11, %cst_10 {dimension_numbers = #tpu.dot_dimension_numbers<[1], [0], [0], [1], [0, 0, 1, 1], [], []>} : vector<8x256xf32>, vector<256x8xf32>, vector<8x8xf32> -> vector<8x8xf32>
    %13 = math.tanh %12 : vector<8x8xf32>
    %14 = tpu.iota {dimensions = array<i32: 1>} : vector<8x8xi32>
    %c0_11 = arith.constant 0 : index
    %c0_12 = arith.constant 0 : index
    %15 = vector.load %arg2[%c0_11, %c0_12] : memref<8x1xi32, #tpu.memory_space<vmem>>, vector<8x1xi32>
    %16 = vector.broadcast %15 : vector<8x1xi32> to vector<8x8xi32>
    %17 = arith.cmpi slt, %14, %16 : vector<8x8xi32>
    %cst_13 = arith.constant dense<0xFF800000> : vector<8xf32>
    %18 = vector.multi_reduction <maximumf>, %13, %cst_13 [1] : vector<8x8xf32> to vector<8xf32>
    %19 = vector.shape_cast %18 : vector<8xf32> to vector<8x1xf32>
    %20 = vector.broadcast %19 : vector<8x1xf32> to vector<8x8xf32>
    %21 = arith.subf %13, %20 : vector<8x8xf32>
    %22 = math.exp %21 : vector<8x8xf32>
    %cst_14 = arith.constant 0.000000e+00 : f32
    %23 = vector.broadcast %cst_14 : f32 to vector<8x8xf32>
    %24 = arith.select %17, %22, %23 : vector<8x8xi1>, vector<8x8xf32>
    %cst_15 = arith.constant dense<0.000000e+00> : vector<8xf32>
    %25 = vector.multi_reduction <add>, %24, %cst_15 [1] : vector<8x8xf32> to vector<8xf32>
    %26 = vector.shape_cast %25 : vector<8xf32> to vector<8x1xf32>
    %cst_16 = arith.constant 1.000000e-30 : f32
    %27 = vector.broadcast %cst_16 : f32 to vector<8x1xf32>
    %28 = arith.maximumf %26, %27 : vector<8x1xf32>
    %29 = vector.broadcast %28 : vector<8x1xf32> to vector<8x8xf32>
    %30 = arith.divf %24, %29 : vector<8x8xf32>
    %c0_17 = arith.constant 0 : index
    %c0_18 = arith.constant 0 : index
    %31 = vector.load %arg11[%c0_17, %c0_18] : memref<8x8xf32, #tpu.memory_space<vmem>>, vector<8x8xf32>
    tpu.vector_store %arg11[%c0_17, %c0_18], %30 {strides = array<i32>} : memref<8x8xf32, #tpu.memory_space<vmem>>, vector<8x8xf32>,
    %c0_19 = arith.constant 0 : index
    %c0_20 = arith.constant 0 : index
    %32 = vector.load %arg7[%c0_19, %c0_20] : memref<8x256xf32, #tpu.memory_space<vmem>>, vector<8x256xf32>
    %cst_21 = arith.constant dense<0.000000e+00> : vector<8x256xf32>
    %33 = tpu.matmul %30, %32, %cst_21 {dimension_numbers = #tpu.dot_dimension_numbers<[1], [0], [0], [1], [0, 0, 1, 1], [], []>} : vector<8x8xf32>, vector<8x256xf32>, vector<8x256xf32> -> vector<8x256xf32>
    %34 = arith.mulf %10, %33 : vector<8x256xf32>
    %c0_22 = arith.constant 0 : index
    %c0_23 = arith.constant 0 : index
    %35 = vector.load %arg8[%c0_22, %c0_23] : memref<256x4xf32, #tpu.memory_space<vmem>>, vector<256x4xf32>
    %cst_24 = arith.constant dense<0.000000e+00> : vector<8x4xf32>
    %36 = tpu.matmul %34, %35, %cst_24 {dimension_numbers = #tpu.dot_dimension_numbers<[1], [0], [0], [1], [0, 0, 1, 1], [], []>} : vector<8x256xf32>, vector<256x4xf32>, vector<8x4xf32> -> vector<8x4xf32>
    %c0_25 = arith.constant 0 : index
    %c0_26 = arith.constant 0 : index
    %37 = vector.load %arg9[%c0_25, %c0_26] : memref<1x4xf32, #tpu.memory_space<vmem>>, vector<1x4xf32>
    %38 = vector.broadcast %37 : vector<1x4xf32> to vector<8x4xf32>
    %39 = arith.addf %36, %38 : vector<8x4xf32>
    %c0_27 = arith.constant 0 : index
    %c0_28 = arith.constant 0 : index
    %40 = vector.load %arg10[%c0_27, %c0_28] : memref<8x4xf32, #tpu.memory_space<vmem>>, vector<8x4xf32>
    tpu.vector_store %arg10[%c0_27, %c0_28], %39 {strides = array<i32>} : memref<8x4xf32, #tpu.memory_space<vmem>>, vector<8x4xf32>,
    return
  }
  func.func @transform_0(%arg0: i32) -> (i32, i32) {
    %c0_i32 = arith.constant 0 : i32
    %c0_i32_0 = arith.constant 0 : i32
    return %arg0, %c0_i32 : i32, i32
  }
  func.func @transform_1(%arg0: i32) -> (i32, i32) {
    %c0_i32 = arith.constant 0 : i32
    %c0_i32_0 = arith.constant 0 : i32
    return %arg0, %c0_i32 : i32, i32
  }
  func.func @transform_2(%arg0: i32) -> (i32, i32) {
    %c0_i32 = arith.constant 0 : i32
    %c0_i32_0 = arith.constant 0 : i32
    %c0_i32_1 = arith.constant 0 : i32
    return %c0_i32, %c0_i32_0 : i32, i32
  }
  func.func @transform_3(%arg0: i32) -> (i32, i32) {
    %c0_i32 = arith.constant 0 : i32
    %c0_i32_0 = arith.constant 0 : i32
    %c0_i32_1 = arith.constant 0 : i32
    return %c0_i32, %c0_i32_0 : i32, i32
  }
  func.func @transform_4(%arg0: i32) -> (i32, i32) {
    %c0_i32 = arith.constant 0 : i32
    %c0_i32_0 = arith.constant 0 : i32
    %c0_i32_1 = arith.constant 0 : i32
    return %c0_i32, %c0_i32_0 : i32, i32
  }
  func.func @transform_5(%arg0: i32) -> (i32, i32) {
    %c0_i32 = arith.constant 0 : i32
    %c0_i32_0 = arith.constant 0 : i32
    %c0_i32_1 = arith.constant 0 : i32
    return %c0_i32, %c0_i32_0 : i32, i32
  }
  func.func @transform_6(%arg0: i32) -> (i32, i32) {
    %c0_i32 = arith.constant 0 : i32
    %c0_i32_0 = arith.constant 0 : i32
    %c0_i32_1 = arith.constant 0 : i32
    return %c0_i32, %c0_i32_0 : i32, i32
  }
  func.func @transform_7(%arg0: i32) -> (i32, i32) {
    %c0_i32 = arith.constant 0 : i32
    %c0_i32_0 = arith.constant 0 : i32
    %c0_i32_1 = arith.constant 0 : i32
    return %c0_i32, %c0_i32_0 : i32, i32
  }
  func.func @transform_8(%arg0: i32) -> (i32, i32) {
    %c0_i32 = arith.constant 0 : i32
    %c0_i32_0 = arith.constant 0 : i32
    %c0_i32_1 = arith.constant 0 : i32
    return %c0_i32, %c0_i32_0 : i32, i32
  }
  func.func @transform_9(%arg0: i32) -> (i32, i32) {
    %c0_i32 = arith.constant 0 : i32
    %c0_i32_0 = arith.constant 0 : i32
    return %arg0, %c0_i32 : i32, i32
  }
  func.func @transform_10(%arg0: i32) -> (i32, i32) {
    %c0_i32 = arith.constant 0 : i32
    %c0_i32_0 = arith.constant 0 : i32
    return %arg0, %c0_i32 : i32, i32
  }
}

</mosaic_0001>

<llo_original>
// kernel: tile.14
$region0: #{tile.14}
  %s0 = inlined_call_operand.vmem [shape: f32[8,50], index: 0, kind: input, shape index: {}]
  %s1 = inlined_call_operand.vmem [shape: f32[1,400], index: 1, kind: output, shape index: {}]
  $region1: #{tile.14} parent=0
    #allocation0 [shape = 'u8[16384]{0}', space=vmem, size = 0x4000, scoped, tag = 'scoped mem for output reshape']
    %v2 = vld [vmem:[%s0] sm:$0x1]
    %vm3 = vcmask 408576
    %4 = vst.msk [vmem:[#allocation0] sm:$0x1] %vm3, %v2
    %s5 = scalar_lea.vmem %s0, 5
    %v6 = vld [vmem:[%s5] sm:$0x1]
    %s7 = scalar_lea.vmem %s0, 5
    %v8 = vld [vmem:[%s7] sm:$0x1]
    %vm9 = vcmask 48128
    %v10 = vsel %vm9, %v8, %v6
    %11 = vrot.lane.b32.xlu0 %v10, 122
    %v12 = vpop.permute.xlu0 %11
    %vm13 = vcmask 359424
    %s14 = scalar_lea.vmem [#allocation0], 16
    %15 = vst.msk [vmem:[%s14] sm:$0x1] %vm13, %v12
    %vm16 = vcmask 1048528
    %s17 = scalar_lea.vmem [#allocation0], 8
    %18 = vst.msk [vmem:[%s17] sm:$0x1] %vm16, %v12
    %s19 = scalar_lea.vmem %s0, 2
    %v20 = vld [vmem:[%s19] sm:$0x1]
    %s21 = scalar_lea.vmem %s0, 2
    %v22 = vld [vmem:[%s21] sm:$0x1]
    %vm23 = vcmask 228352
    %v24 = vsel %vm23, %v22, %v20
    %25 = vrot.lane.b32.xlu0 %v24, 100
    %v26 = vpop.permute.xlu0 %25
    %vm27 = vcmask 179200
    %s28 = scalar_lea.vmem [#allocation0], 8
    %29 = vst.msk [vmem:[%s28] sm:$0x1] %vm27, %v26
    %vm30 = vcmask 1048352
    %31 = vst.msk [vmem:[#allocation0] sm:$0x1] %vm30, %v26
    %s32 = scalar_lea.vmem %s0, 7
    %v33 = vld [vmem:[%s32] sm:$0x1]
    %s34 = scalar_lea.vmem %s0, 7
    %v35 = vld [vmem:[%s34] sm:$0x1]
    %vm36 = vcmask 277504
    %v37 = vsel %vm36, %v35, %v33
    %38 = vrot.lane.b32.xlu0 %v37, 94
    %v39 = vpop.permute.xlu0 %38
    %vm40 = vcmask 130048
    %s41 = scalar_lea.vmem [#allocation0], 24
    %42 = vst.msk [vmem:[%s41] sm:$0x1] %vm40, %v39
    %vm43 = vcmask 1048304
    %s44 = scalar_lea.vmem [#allocation0], 16
    %45 = vst.msk [vmem:[%s44] sm:$0x1] %vm43, %v39
    %s46 = scalar_lea.vmem %s0, 4
    %v47 = vld [vmem:[%s46] sm:$0x1]
    %48 = vrot.lane.b32.xlu0 %v47, 72
    %v49 = vpop.permute.xlu0 %48
    %vm50 = vcmask 998976
    %s51 = scalar_lea.vmem [#allocation0], 8
    %52 = vst.msk [vmem:[%s51] sm:$0x1] %vm50, %v49
    %s53 = scalar_lea.vmem %s0, 1
    %v54 = vld [vmem:[%s53] sm:$0x1]
    %55 = vrot.lane.b32.xlu0 %v54, 50
    %v56 = vpop.permute.xlu0 %55
    %vm57 = vcmask 818576
    %58 = vst.msk [vmem:[#allocation0] sm:$0x1] %vm57, %v56
    %s59 = scalar_lea.vmem %s0, 6
    %v60 = vld [vmem:[%s59] sm:$0x1]
    %61 = vrot.lane.b32.xlu0 %v60, 44
    %v62 = vpop.permute.xlu0 %61
    %vm63 = vcmask 769376
    %s64 = scalar_lea.vmem [#allocation0], 16
    %65 = vst.msk [vmem:[%s64] sm:$0x1] %vm63, %v62
    %s66 = scalar_lea.vmem %s0, 3
    %v67 = vld [vmem:[%s66] sm:$0x1]
    %68 = vrot.lane.b32.xlu0 %v67, 22
    %v69 = vpop.permute.xlu0 %68
    %vm70 = vcmask 588976
    %s71 = scalar_lea.vmem [#allocation0], 8
    %72 = vst.msk [vmem:[%s71] sm:$0x1] %vm70, %v69
    %s74 = ssub.s32 2, 1
    %v75 = vld [vmem:[#allocation0] sm:%s74]
    %s77 = ssub.s32 2, 1
    %78 = vst [vmem:[%s1] sm:%s77] %v75
    %s79 = scalar_lea.vmem [#allocation0], 8
    %v80 = vld [vmem:[%s79] sm:%s74]
    %s82 = ssub.s32 2, 1
    %s83 = scalar_lea.vmem %s1, 1
    %84 = vst [vmem:[%s83] sm:%s82] %v80
    %s85 = scalar_lea.vmem [#allocation0], 16
    %v86 = vld [vmem:[%s85] sm:%s74]
    %s88 = ssub.s32 2, 1
    %s89 = scalar_lea.vmem %s1, 2
    %90 = vst [vmem:[%s89] sm:%s88] %v86
    %s91 = scalar_lea.vmem [#allocation0], 24
    %v92 = vld [vmem:[%s91] sm:%s74]
    %s94 = ssub.s32 2, 1
    %s95 = scalar_lea.vmem %s1, 3
    %96 = vst [vmem:[%s95] sm:%s94] %v92

// kernel: nn_attention_forward.1
$region0: #{nn_attention_forward.1}
  #allocation0 [shape = 'u32[]', space=smem, size = 0x4, offset = 0x4, fixed_abs, tag = 'smem constant byte address 0x4 - core index']
  #allocation1 [shape = 'u32[72,128]{1,0:T(1,128)}', space=vmem, size = 0x9000, scoped, tag = 'internal scratch']
  %s0 = inlined_call_operand.vmem [shape: s32[16,8], index: 0, kind: input, shape index: {}]
  %s1 = inlined_call_operand.vmem [shape: s32[16,1], index: 1, kind: input, shape index: {}]
  %s2 = inlined_call_operand.vmem [shape: f32[8,400], index: 2, kind: input, shape index: {}]
  %s3 = inlined_call_operand.vmem [shape: f32[1,400], index: 3, kind: input, shape index: {}]
  %s4 = inlined_call_operand.vmem [shape: f32[400,256], index: 4, kind: input, shape index: {}]
  %s5 = inlined_call_operand.vmem [shape: f32[256,8], index: 5, kind: input, shape index: {}]
  %s6 = inlined_call_operand.vmem [shape: f32[8,256], index: 6, kind: input, shape index: {}]
  %s7 = inlined_call_operand.vmem [shape: f32[256,4], index: 7, kind: input, shape index: {}]
  %s8 = inlined_call_operand.vmem [shape: f32[1,4], index: 8, kind: input, shape index: {}]
  %s9 = inlined_call_operand.vmem [shape: f32[16,4], index: 9, kind: output, shape index: {0}]
  %s10 = inlined_call_operand.vmem [shape: f32[16,8], index: 10, kind: output, shape index: {1}]
  %11 = xla_tuple %s9, %s10
  %s12 = sld [smem:[#allocation0]]
  $region77: #{nn_attention_forward.1} parent=0
    _
  %s14 = ssub.s32 1, %s12
  %s15 = scalar_select 0, %s14, %s12
  loop: start=0, step=1, limit=4
  $region2: #{nn_attention_forward.1} parent=0 // loop_pre_header
    _
  $region3: #{nn_attention_forward.1} parent=0 // loop_header
    %s17 = sphi 0, %s21
    %p18 = scmp.ge.s32.totalorder %s17, 4
    %s27 = sphi 0, %s29
    %s30 = sphi 0, %s27
    %s31 = sphi 0, %s30
    %s47 = sphi 0, %s31
    %s53 = sphi 0, %s55
    %s56 = sphi 0, %s53
    %s57 = sphi 0, %s56
    %s73 = sphi 0, %s57
    %s77 = sphi 0, %s77
    %s79 = sphi 0, %s77
    %s80 = sphi 0, %s79
    %s94 = sphi 0, %s80
    %s98 = sphi 0, %s98
    %s100 = sphi 0, %s98
    %s101 = sphi 0, %s100
    %s115 = sphi 0, %s101
    %s119 = sphi 0, %s119
    %s121 = sphi 0, %s119
    %s122 = sphi 0, %s121
    %s136 = sphi 0, %s122
    %s140 = sphi 0, %s140
    %s142 = sphi 0, %s140
    %s143 = sphi 0, %s142
    %s157 = sphi 0, %s143
    %s161 = sphi 0, %s161
    %s163 = sphi 0, %s161
    %s164 = sphi 0, %s163
    %s178 = sphi 0, %s164
    %s182 = sphi 0, %s182
    %s184 = sphi 0, %s182
    %s185 = sphi 0, %s184
    %s199 = sphi 0, %s185
    %s203 = sphi 0, %s203
    %s205 = sphi 0, %s203
    %s206 = sphi 0, %s205
    %s220 = sphi 0, %s206
    %s226 = sphi 0, %s228
    %s229 = sphi 0, %s226
    %s230 = sphi 0, %s229
    %s246 = sphi 0, %s230
    %s252 = sphi 0, %s254
    %s255 = sphi 0, %s252
    %s256 = sphi 0, %s255
    %s272 = sphi 0, %s256
  $region4: #{nn_attention_forward.1} parent=0 // loop_header_branch
    %20 = sbr.rel (%p18) target = $region8
  $region5: #{nn_attention_forward.1} parent=0 // loop_body
    %s22 = ssub.s32 %s17, 1
    %s23 = ssub.s32 %s17, 2
    %s24 = sadd.s32 %s17, 1
    %s25 = ssub.s32 %s17, %s24
    %p26 = scmp.eq.s32.totalorder %s25, 0
    %s28 = sadd.s32 %s27, 1
    %s29 = scalar_select %p26, %s27, %s28
    %p32 = pneg %p26
    %p33 = scmp.eq.s32.totalorder %s17, 1
    %p34 = por %p32, %p33
    %p35 = scmp.ne.s32.totalorder %s27, %s30
    %p36 = scmp.eq.s32.totalorder %s17, 0
    %p37 = por %p35, %p36
    %p38 = scmp.ne.s32.totalorder %s27, %s30
    %p39 = scmp.eq.s32.totalorder %s22, 1
    %p40 = por %p38, %p39
    %p41 = scmp.ne.s32.totalorder %s30, %s31
    %p42 = scmp.eq.s32.totalorder %s22, 0
    %p43 = por %p41, %p42
    %p44 = scmp.ne.s32.totalorder %s30, %s31
    %p45 = scmp.eq.s32.totalorder %s23, 1
    %p46 = por %p44, %p45
    %p48 = scmp.ne.s32.totalorder %s31, %s47
    %p49 = scmp.eq.s32.totalorder %s23, 0
    %p50 = por %p48, %p49
    %s51 = ssub.s32 %s17, %s24
    %p52 = scmp.eq.s32.totalorder %s51, 0
    %s54 = sadd.s32 %s53, 1
    %s55 = scalar_select %p52, %s53, %s54
    %p58 = pneg %p52
    %p59 = scmp.eq.s32.totalorder %s17, 1
    %p60 = por %p58, %p59
    %p61 = scmp.ne.s32.totalorder %s53, %s56
    %p62 = scmp.eq.s32.totalorder %s17, 0
    %p63 = por %p61, %p62
    %p64 = scmp.ne.s32.totalorder %s53, %s56
    %p65 = scmp.eq.s32.totalorder %s22, 1
    %p66 = por %p64, %p65
    %p67 = scmp.ne.s32.totalorder %s56, %s57
    %p68 = scmp.eq.s32.totalorder %s22, 0
    %p69 = por %p67, %p68
    %p70 = scmp.ne.s32.totalorder %s56, %s57
    %p71 = scmp.eq.s32.totalorder %s23, 1
    %p72 = por %p70, %p71
    %p74 = scmp.ne.s32.totalorder %s57, %s73
    %p75 = scmp.eq.s32.totalorder %s23, 0
    %p76 = por %p74, %p75
    %s78 = sadd.s32 %s77, 1
    %p81 = scmp.eq.s32.totalorder %s17, 1
    %p82 = scmp.ne.s32.totalorder %s77, %s79
    %p83 = scmp.eq.s32.totalorder %s17, 0
    %p84 = por %p82, %p83
    %p85 = scmp.ne.s32.totalorder %s77, %s79
    %p86 = scmp.eq.s32.totalorder %s22, 1
    %p87 = por %p85, %p86
    %p88 = scmp.ne.s32.totalorder %s79, %s80
    %p89 = scmp.eq.s32.totalorder %s22, 0
    %p90 = por %p88, %p89
    %p91 = scmp.ne.s32.totalorder %s79, %s80
    %p92 = scmp.eq.s32.totalorder %s23, 1
    %p93 = por %p91, %p92
    %p95 = scmp.ne.s32.totalorder %s80, %s94
    %p96 = scmp.eq.s32.totalorder %s23, 0
    %p97 = por %p95, %p96
    %s99 = sadd.s32 %s98, 1
    %p102 = scmp.eq.s32.totalorder %s17, 1
    %p103 = scmp.ne.s32.totalorder %s98, %s100
    %p104 = scmp.eq.s32.totalorder %s17, 0
    %p105 = por %p103, %p104
    %p106 = scmp.ne.s32.totalorder %s98, %s100
    %p107 = scmp.eq.s32.totalorder %s22, 1
    %p108 = por %p106, %p107
    %p109 = scmp.ne.s32.totalorder %s100, %s101
    %p110 = scmp.eq.s32.totalorder %s22, 0
    %p111 = por %p109, %p110
    %p112 = scmp.ne.s32.totalorder %s100, %s101
    %p113 = scmp.eq.s32.totalorder %s23, 1
    %p114 = por %p112, %p113
    %p116 = scmp.ne.s32.totalorder %s101, %s115
    %p117 = scmp.eq.s32.totalorder %s23, 0
    %p118 = por %p116, %p117
    %s120 = sadd.s32 %s119, 1
    %p123 = scmp.eq.s32.totalorder %s17, 1
    %p124 = scmp.ne.s32.totalorder %s119, %s121
    %p125 = scmp.eq.s32.totalorder %s17, 0
    %p126 = por %p124, %p125
    %p127 = scmp.ne.s32.totalorder %s119, %s121
    %p128 = scmp.eq.s32.totalorder %s22, 1
    %p129 = por %p127, %p128
    %p130 = scmp.ne.s32.totalorder %s121, %s122
    %p131 = scmp.eq.s32.totalorder %s22, 0
    %p132 = por %p130, %p131
    %p133 = scmp.ne.s32.totalorder %s121, %s122
    %p134 = scmp.eq.s32.totalorder %s23, 1
    %p135 = por %p133, %p134
    %p137 = scmp.ne.s32.totalorder %s122, %s136
    %p138 = scmp.eq.s32.totalorder %s23, 0
    %p139 = por %p137, %p138
    %s141 = sadd.s32 %s140, 1
    %p144 = scmp.eq.s32.totalorder %s17, 1
    %p145 = scmp.ne.s32.totalorder %s140, %s142
    %p146 = scmp.eq.s32.totalorder %s17, 0
    %p147 = por %p145, %p146
    %p148 = scmp.ne.s32.totalorder %s140, %s142
    %p149 = scmp.eq.s32.totalorder %s22, 1
    %p150 = por %p148, %p149
    %p151 = scmp.ne.s32.totalorder %s142, %s143
    %p152 = scmp.eq.s32.totalorder %s22, 0
    %p153 = por %p151, %p152
    %p154 = scmp.ne.s32.totalorder %s142, %s143
    %p155 = scmp.eq.s32.totalorder %s23, 1
    %p156 = por %p154, %p155
    %p158 = scmp.ne.s32.totalorder %s143, %s157
    %p159 = scmp.eq.s32.totalorder %s23, 0
    %p160 = por %p158, %p159
    %s162 = sadd.s32 %s161, 1
    %p165 = scmp.eq.s32.totalorder %s17, 1
    %p166 = scmp.ne.s32.totalorder %s161, %s163
    %p167 = scmp.eq.s32.totalorder %s17, 0
    %p168 = por %p166, %p167
    %p169 = scmp.ne.s32.totalorder %s161, %s163
    %p170 = scmp.eq.s32.totalorder %s22, 1
    %p171 = por %p169, %p170
    %p172 = scmp.ne.s32.totalorder %s163, %s164
    %p173 = scmp.eq.s32.totalorder %s22, 0
    %p174 = por %p172, %p173
    %p175 = scmp.ne.s32.totalorder %s163, %s164
    %p176 = scmp.eq.s32.totalorder %s23, 1
    %p177 = por %p175, %p176
    %p179 = scmp.ne.s32.totalorder %s164, %s178
    %p180 = scmp.eq.s32.totalorder %s23, 0
    %p181 = por %p179, %p180
    %s183 = sadd.s32 %s182, 1
    %p186 = scmp.eq.s32.totalorder %s17, 1
    %p187 = scmp.ne.s32.totalorder %s182, %s184
    %p188 = scmp.eq.s32.totalorder %s17, 0
    %p189 = por %p187, %p188
    %p190 = scmp.ne.s32.totalorder %s182, %s184
    %p191 = scmp.eq.s32.totalorder %s22, 1
    %p192 = por %p190, %p191
    %p193 = scmp.ne.s32.totalorder %s184, %s185
    %p194 = scmp.eq.s32.totalorder %s22, 0
    %p195 = por %p193, %p194
    %p196 = scmp.ne.s32.totalorder %s184, %s185
    %p197 = scmp.eq.s32.totalorder %s23, 1
    %p198 = por %p196, %p197
    %p200 = scmp.ne.s32.totalorder %s185, %s199
    %p201 = scmp.eq.s32.totalorder %s23, 0
    %p202 = por %p200, %p201
    %s204 = sadd.s32 %s203, 1
    %p207 = scmp.eq.s32.totalorder %s17, 1
    %p208 = scmp.ne.s32.totalorder %s203, %s205
    %p209 = scmp.eq.s32.totalorder %s17, 0
    %p210 = por %p208, %p209
    %p211 = scmp.ne.s32.totalorder %s203, %s205
    %p212 = scmp.eq.s32.totalorder %s22, 1
    %p213 = por %p211, %p212
    %p214 = scmp.ne.s32.totalorder %s205, %s206
    %p215 = scmp.eq.s32.totalorder %s22, 0
    %p216 = por %p214, %p215
    %p217 = scmp.ne.s32.totalorder %s205, %s206
    %p218 = scmp.eq.s32.totalorder %s23, 1
    %p219 = por %p217, %p218
    %p221 = scmp.ne.s32.totalorder %s206, %s220
    %p222 = scmp.eq.s32.totalorder %s23, 0
    %p223 = por %p221, %p222
    %s224 = ssub.s32 %s17, %s24
    %p225 = scmp.eq.s32.totalorder %s224, 0
    %s227 = sadd.s32 %s226, 1
    %s228 = scalar_select %p225, %s226, %s227
    %p231 = pneg %p225
    %p232 = scmp.eq.s32.totalorder %s17, 1
    %p233 = por %p231, %p232
    %p234 = scmp.ne.s32.totalorder %s226, %s229
    %p235 = scmp.eq.s32.totalorder %s17, 0
    %p236 = por %p234, %p235
    %p237 = scmp.ne.s32.totalorder %s226, %s229
    %p238 = scmp.eq.s32.totalorder %s22, 1
    %p239 = por %p237, %p238
    %p240 = scmp.ne.s32.totalorder %s229, %s230
    %p241 = scmp.eq.s32.totalorder %s22, 0
    %p242 = por %p240, %p241
    %p243 = scmp.ne.s32.totalorder %s229, %s230
    %p244 = scmp.eq.s32.totalorder %s23, 1
    %p245 = por %p243, %p244
    %p247 = scmp.ne.s32.totalorder %s230, %s246
    %p248 = scmp.eq.s32.totalorder %s23, 0
    %p249 = por %p247, %p248
    %s250 = ssub.s32 %s17, %s24
    %p251 = scmp.eq.s32.totalorder %s250, 0
    %s253 = sadd.s32 %s252, 1
    %s254 = scalar_select %p251, %s252, %s253
    %p257 = pneg %p251
    %p258 = scmp.eq.s32.totalorder %s17, 1
    %p259 = por %p257, %p258
    %p260 = scmp.ne.s32.totalorder %s252, %s255
    %p261 = scmp.eq.s32.totalorder %s17, 0
    %p262 = por %p260, %p261
    %p263 = scmp.ne.s32.totalorder %s252, %s255
    %p264 = scmp.eq.s32.totalorder %s22, 1
    %p265 = por %p263, %p264
    %p266 = scmp.ne.s32.totalorder %s255, %s256
    %p267 = scmp.eq.s32.totalorder %s22, 0
    %p268 = por %p266, %p267
    %p269 = scmp.ne.s32.totalorder %s255, %s256
    %p270 = scmp.eq.s32.totalorder %s23, 1
    %p271 = por %p269, %p270
    %p273 = scmp.ne.s32.totalorder %s256, %s272
    %p274 = scmp.eq.s32.totalorder %s23, 0
    %p275 = por %p273, %p274
    %p276 = scmp.le.s32.totalorder 1, %s17
    %p277 = scmp.lt.s32.totalorder %s17, 3
    %p278 = pnand %p276, %p277
    %p279 = pneg %p278
    // Predicated region
    $region9: #{nn_attention_forward.1} parent=5 // pred_check
      _
    $region10: #{nn_attention_forward.1} parent=5 // pred_check_branch
      %281 = sbr.rel (%p278) target = $region12
    $region11: #{nn_attention_forward.1} parent=5 // pred_region
      %s282 = ssub.s32 %s17, 1
      // Predicated region
      $region13: #{nn_attention_forward.1} parent=11 // pred_check
        %p283 = pneg %p90
      $region14: #{nn_attention_forward.1} parent=11 // pred_check_branch
        %285 = sbr.rel (%p283) target = $region16
      $region15: #{nn_attention_forward.1} parent=11 // pred_region
        _
      $region16: #{nn_attention_forward.1} parent=11 // pred_fallthru
        _
      // Predicated region
      $region17: #{nn_attention_forward.1} parent=11 // pred_check
        %p286 = pneg %p111
      $region18: #{nn_attention_forward.1} parent=11 // pred_check_branch
        %288 = sbr.rel (%p286) target = $region20
      $region19: #{nn_attention_forward.1} parent=11 // pred_region
        _
      $region20: #{nn_attention_forward.1} parent=11 // pred_fallthru
        _
      // Predicated region
      $region21: #{nn_attention_forward.1} parent=11 // pred_check
        %p289 = pneg %p132
      $region22: #{nn_attention_forward.1} parent=11 // pred_check_branch
        %291 = sbr.rel (%p289) target = $region24
      $region23: #{nn_attention_forward.1} parent=11 // pred_region
        _
      $region24: #{nn_attention_forward.1} parent=11 // pred_fallthru
        _
      // Predicated region
      $region25: #{nn_attention_forward.1} parent=11 // pred_check
        %p292 = pneg %p153
      $region26: #{nn_attention_forward.1} parent=11 // pred_check_branch
        %294 = sbr.rel (%p292) target = $region28
      $region27: #{nn_attention_forward.1} parent=11 // pred_region
        _
      $region28: #{nn_attention_forward.1} parent=11 // pred_fallthru
        _
      // Predicated region
      $region29: #{nn_attention_forward.1} parent=11 // pred_check
        %p295 = pneg %p174
      $region30: #{nn_attention_forward.1} parent=11 // pred_check_branch
        %297 = sbr.rel (%p295) target = $region32
      $region31: #{nn_attention_forward.1} parent=11 // pred_region
        _
      $region32: #{nn_attention_forward.1} parent=11 // pred_fallthru
        _
      // Predicated region
      $region33: #{nn_attention_forward.1} parent=11 // pred_check
        %p298 = pneg %p195
      $region34: #{nn_attention_forward.1} parent=11 // pred_check_branch
        %300 = sbr.rel (%p298) target = $region36
      $region35: #{nn_attention_forward.1} parent=11 // pred_region
        _
      $region36: #{nn_attention_forward.1} parent=11 // pred_fallthru
        _
      // Predicated region
      $region37: #{nn_attention_forward.1} parent=11 // pred_check
        %p301 = pneg %p216
      $region38: #{nn_attention_forward.1} parent=11 // pred_check_branch
        %303 = sbr.rel (%p301) target = $region40
      $region39: #{nn_attention_forward.1} parent=11 // pred_region
        _
      $region40: #{nn_attention_forward.1} parent=11 // pred_fallthru
        _
    $region12: #{nn_attention_forward.1} parent=5 // pred_fallthru
      _
    %p304 = scmp.lt.s32.totalorder %s17, 2
    // Predicated region
    $region41: #{nn_attention_forward.1} parent=5 // pred_check
      %p305 = pneg %p304
    $region42: #{nn_attention_forward.1} parent=5 // pred_check_branch
      %307 = sbr.rel (%p305) target = $region44
    $region43: #{nn_attention_forward.1} parent=5 // pred_region
      // Predicated region
      $region45: #{nn_attention_forward.1} parent=43 // pred_check
        %p308 = pneg %p37
      $region46: #{nn_attention_forward.1} parent=43 // pred_check_branch
        %310 = sbr.rel (%p308) target = $region48
      $region47: #{nn_attention_forward.1} parent=43 // pred_region
        %p311 = scmp.lt.s32.totalorder %s17, 1
        %s312 = scalar_select %p311, %s17, 1
        %s313 = smul.addr %s312, 8
        %s314 = scalar_lea.vmem %s0, %s313
      $region48: #{nn_attention_forward.1} parent=43 // pred_fallthru
        _
      // Predicated region
      $region49: #{nn_attention_forward.1} parent=43 // pred_check
        %p315 = pneg %p63
      $region50: #{nn_attention_forward.1} parent=43 // pred_check_branch
        %317 = sbr.rel (%p315) target = $region52
      $region51: #{nn_attention_forward.1} parent=43 // pred_region
        %p318 = scmp.lt.s32.totalorder %s17, 1
        %s319 = scalar_select %p318, %s17, 1
        %s320 = smul.addr %s319, 8
        %s321 = scalar_lea.vmem %s1, %s320
      $region52: #{nn_attention_forward.1} parent=43 // pred_fallthru
        _
    $region44: #{nn_attention_forward.1} parent=5 // pred_fallthru
      _
    %p322 = scmp.le.s32.totalorder 1, %s17
    %p323 = scmp.lt.s32.totalorder %s17, 3
    %p324 = pnand %p322, %p323
    %p325 = pneg %p324
    // Predicated region
    $region53: #{nn_attention_forward.1} parent=5 // pred_check
      _
    $region54: #{nn_attention_forward.1} parent=5 // pred_check_branch
      %327 = sbr.rel (%p324) target = $region56
    $region55: #{nn_attention_forward.1} parent=5 // pred_region
      %s328 = ssub.s32 %s17, 1
      %p329 = scmp.lt.s32.totalorder %s22, 1
      %s330 = scalar_select %p329, %s22, 1
      %s331 = smul.addr %s330, 8
      %s332 = scalar_lea.vmem %s0, %s331
      %p333 = pneg %p43
      %p334 = pneg %p40
      %p335 = scmp.lt.s32.totalorder %s22, 1
      %s336 = scalar_select %p335, %s22, 1
      %s337 = smul.addr %s336, 8
      %s338 = scalar_lea.vmem %s1, %s337
      %p339 = pneg %p69
      %p340 = pneg %p66
      %p341 = pneg %p90
      %p342 = pneg %p87
      %p343 = pneg %p111
      %p344 = pneg %p108
      %p345 = pneg %p132
      %p346 = pneg %p129
      %p347 = pneg %p153
      %p348 = pneg %p150
      %p349 = pneg %p174
      %p350 = pneg %p171
      %p351 = pneg %p195
      %p352 = pneg %p192
      %p353 = pneg %p216
      %p354 = pneg %p213
      %p355 = pneg %p242
      %p356 = pneg %p239
      %p357 = scmp.lt.s32.totalorder %s22, 1
      %s358 = scalar_select %p357, %s22, 1
      %s359 = smul.addr %s358, 8
      %s360 = scalar_lea.vmem %s9, %s359
      %p361 = pneg %p268
      %p362 = pneg %p265
      %p363 = scmp.lt.s32.totalorder %s22, 1
      %s364 = scalar_select %p363, %s22, 1
      %s365 = smul.addr %s364, 8
      %s366 = scalar_lea.vmem %s10, %s365
      %p367 = scmp.lt.s32.totalorder %s22, 1
      %s368 = scalar_select %p367, %s22, 1
      %s369 = smul.addr %s368, 8
      %s370 = scalar_lea.vmem %s0, %s369
      %p371 = scmp.lt.s32.totalorder %s22, 1
      %s372 = scalar_select %p371, %s22, 1
      %s373 = smul.addr %s372, 8
      %s374 = scalar_lea.vmem %s1, %s373
      %p375 = scmp.lt.s32.totalorder %s22, 1
      %s376 = scalar_select %p375, %s22, 1
      %s377 = smul.addr %s376, 8
      %s378 = scalar_lea.vmem %s9, %s377
      %p379 = scmp.lt.s32.totalorder %s22, 1
      %s380 = scalar_select %p379, %s22, 1
      %s381 = smul.addr %s380, 8
      %s382 = scalar_lea.vmem %s10, %s381
      %v383 = vld [vmem:[%s370] sm:$0xff]
      %v384 = vcvt.s32.f32 %v383
      %v385 = vld [vmem:[%s2] sm:$0xff]
      %v386 = vld [vmem:[%s2 + $0x8] sm:$0xff]
      %v387 = vld [vmem:[%s2 + $0x10] sm:$0xff]
      %v388 = vld [vmem:[%s2 + $0x18] sm:$0xff]
      %vm389 = vcmask 64512
      %v391 = vsel %vm389, %v384, 0
      %393 = vmatpush.msra.mxu0 0.0
      %394 = vmatpush.msra.mxu0 0.0
      %395 = vmatpush.msra.mxu0 0.0
      %396 = vmatpush.msra.mxu0 0.0
      %397 = vmatpush.msra.mxu0 0.0
      %398 = vmatpush.msra.mxu0 0.0
      %399 = vmatpush.msra.mxu0 0.0
      %400 = vmatpush.msra.mxu0 0.0
      %401 = vmatpush.msra.mxu0 0.0
      %402 = vmatpush.msra.mxu0 0.0
      %403 = vmatpush.msra.mxu0 0.0
      %404 = vmatpush.msra.mxu0 0.0
      %405 = vmatpush.msra.mxu0 0.0
      %406 = vmatpush.msra.mxu0 0.0
      %407 = vmatpush.msra.mxu0 0.0
      %408 = vmatpush.msra.mxu0 %v385
      %409 = vmatmul.f32.gmra.mxu0 %v391
      %v410 = vpop.f32.mrf.mxu0
      %v411 = vadd.f32 0.0, %v410
      %412 = vdwg.mxu0
      %413 = vmatpush.msra.mxu0 0.0
      %414 = vmatpush.msra.mxu0 0.0
      %415 = vmatpush.msra.mxu0 0.0
      %416 = vmatpush.msra.mxu0 0.0
      %417 = vmatpush.msra.mxu0 0.0
      %418 = vmatpush.msra.mxu0 0.0
      %419 = vmatpush.msra.mxu0 0.0
      %420 = vmatpush.msra.mxu0 0.0
      %421 = vmatpush.msra.mxu0 0.0
      %422 = vmatpush.msra.mxu0 0.0
      %423 = vmatpush.msra.mxu0 0.0
      %424 = vmatpush.msra.mxu0 0.0
      %425 = vmatpush.msra.mxu0 0.0
      %426 = vmatpush.msra.mxu0 0.0
      %427 = vmatpush.msra.mxu0 0.0
      %428 = vmatpush.msra.mxu0 %v386
      %429 = vmatmul.f32.gmra.mxu0 %v391
      %v430 = vpop.f32.mrf.mxu0
      %v431 = vadd.f32 0.0, %v430
      %432 = vdwg.mxu0
      %433 = vmatpush.msra.mxu0 0.0
      %434 = vmatpush.msra.mxu0 0.0
      %435 = vmatpush.msra.mxu0 0.0
      %436 = vmatpush.msra.mxu0 0.0
      %437 = vmatpush.msra.mxu0 0.0
      %438 = vmatpush.msra.mxu0 0.0
      %439 = vmatpush.msra.mxu0 0.0
      %440 = vmatpush.msra.mxu0 0.0
      %441 = vmatpush.msra.mxu0 0.0
      %442 = vmatpush.msra.mxu0 0.0
      %443 = vmatpush.msra.mxu0 0.0
      %444 = vmatpush.msra.mxu0 0.0
      %445 = vmatpush.msra.mxu0 0.0
      %446 = vmatpush.msra.mxu0 0.0
      %447 = vmatpush.msra.mxu0 0.0
      %448 = vmatpush.msra.mxu0 %v387
      %449 = vmatmul.f32.gmra.mxu0 %v391
      %v450 = vpop.f32.mrf.mxu0
      %v451 = vadd.f32 0.0, %v450
      %452 = vdwg.mxu0
      %453 = vmatpush.msra.mxu0 0.0
      %454 = vmatpush.msra.mxu0 0.0
      %455 = vmatpush.msra.mxu0 0.0
      %456 = vmatpush.msra.mxu0 0.0
      %457 = vmatpush.msra.mxu0 0.0
      %458 = vmatpush.msra.mxu0 0.0
      %459 = vmatpush.msra.mxu0 0.0
      %460 = vmatpush.msra.mxu0 0.0
      %461 = vmatpush.msra.mxu0 0.0
      %462 = vmatpush.msra.mxu0 0.0
      %463 = vmatpush.msra.mxu0 0.0
      %464 = vmatpush.msra.mxu0 0.0
      %465 = vmatpush.msra.mxu0 0.0
      %466 = vmatpush.msra.mxu0 0.0
      %467 = vmatpush.msra.mxu0 0.0
      %468 = vmatpush.msra.mxu0 %v388
      %469 = vmatmul.f32.gmra.mxu0 %v391
      %v470 = vpop.f32.mrf.mxu0
      %v471 = vadd.f32 0.0, %v470
      %472 = vdwg.mxu0
      %v473 = vld [vmem:[%s3] sm:$0xf]
      %v475 = vperm.slane %v473, 0
      %v476 = vperm.slane %v473, 1
      %v477 = vperm.slane %v473, 2
      %v478 = vperm.slane %v473, 3
      %vm483 = vcmp.eq.f32.partialorder %v411, %v475
      %vm484 = vcmp.eq.f32.partialorder %v431, %v476
      %vm485 = vcmp.eq.f32.partialorder %v451, %v477
      %vm486 = vcmp.eq.f32.partialorder %v471, %v478
      %v487 = vsel %vm483, 1, 0
      %v488 = vsel %vm484, 1, 0
      %v489 = vsel %vm485, 1, 0
      %v490 = vsel %vm486, 1, 0
      %v491 = vcvt.s32.f32 %v487
      %v492 = vcvt.s32.f32 %v488
      %v493 = vcvt.s32.f32 %v489
      %v494 = vcvt.s32.f32 %v490
      %v495 = vld [vmem:[%s4] sm:$0xff]
      %v496 = vld [vmem:[%s4 + $0x8] sm:$0xff]
      %v497 = vld [vmem:[%s4 + $0x10] sm:$0xff]
      %v498 = vld [vmem:[%s4 + $0x18] sm:$0xff]
      %v499 = vld [vmem:[%s4 + $0x20] sm:$0xff]
      %v500 = vld [vmem:[%s4 + $0x28] sm:$0xff]
      %v501 = vld [vmem:[%s4 + $0x30] sm:$0xff]
      %v502 = vld [vmem:[%s4 + $0x38] sm:$0xff]
      %v503 = vld [vmem:[%s4 + $0x40] sm:$0xff]
      %v504 = vld [vmem:[%s4 + $0x48] sm:$0xff]
      %v505 = vld [vmem:[%s4 + $0x50] sm:$0xff]
      %v506 = vld [vmem:[%s4 + $0x58] sm:$0xff]
      %v507 = vld [vmem:[%s4 + $0x60] sm:$0xff]
      %v508 = vld [vmem:[%s4 + $0x68] sm:$0xff]
      %v509 = vld [vmem:[%s4 + $0x70] sm:$0xff]
      %v510 = vld [vmem:[%s4 + $0x78] sm:$0xff]
      %v511 = vld [vmem:[%s4 + $0x80] sm:$0xff]
      %v512 = vld [vmem:[%s4 + $0x88] sm:$0xff]
      %v513 = vld [vmem:[%s4 + $0x90] sm:$0xff]
      %v514 = vld [vmem:[%s4 + $0x98] sm:$0xff]
      %v515 = vld [vmem:[%s4 + $0xa0] sm:$0xff]
      %v516 = vld [vmem:[%s4 + $0xa8] sm:$0xff]
      %v517 = vld [vmem:[%s4 + $0xb0] sm:$0xff]
      %v518 = vld [vmem:[%s4 + $0xb8] sm:$0xff]
      %v519 = vld [vmem:[%s4 + $0xc0] sm:$0xff]
      %v520 = vld [vmem:[%s4 + $0xc8] sm:$0xff]
      %v521 = vld [vmem:[%s4 + $0xd0] sm:$0xff]
      %v522 = vld [vmem:[%s4 + $0xd8] sm:$0xff]
      %v523 = vld [vmem:[%s4 + $0xe0] sm:$0xff]
      %v524 = vld [vmem:[%s4 + $0xe8] sm:$0xff]
      %v525 = vld [vmem:[%s4 + $0xf0] sm:$0xff]
      %v526 = vld [vmem:[%s4 + $0xf8] sm:$0xff]
      %v527 = vld [vmem:[%s4 + $0x100] sm:$0xff]
      %v528 = vld [vmem:[%s4 + $0x108] sm:$0xff]
      %v529 = vld [vmem:[%s4 + $0x110] sm:$0xff]
      %v530 = vld [vmem:[%s4 + $0x118] sm:$0xff]
      %v531 = vld [vmem:[%s4 + $0x120] sm:$0xff]
      %v532 = vld [vmem:[%s4 + $0x128] sm:$0xff]
      %v533 = vld [vmem:[%s4 + $0x130] sm:$0xff]
      %v534 = vld [vmem:[%s4 + $0x138] sm:$0xff]
      %v535 = vld [vmem:[%s4 + $0x140] sm:$0xff]
      %v536 = vld [vmem:[%s4 + $0x148] sm:$0xff]
      %v537 = vld [vmem:[%s4 + $0x150] sm:$0xff]
      %v538 = vld [vmem:[%s4 + $0x158] sm:$0xff]
      %v539 = vld [vmem:[%s4 + $0x160] sm:$0xff]
      %v540 = vld [vmem:[%s4 + $0x168] sm:$0xff]
      %v541 = vld [vmem:[%s4 + $0x170] sm:$0xff]
      %v542 = vld [vmem:[%s4 + $0x178] sm:$0xff]
      %v543 = vld [vmem:[%s4 + $0x180] sm:$0xff]
      %v544 = vld [vmem:[%s4 + $0x188] sm:$0xff]
      %v545 = vld [vmem:[%s4 + $0x190] sm:$0xff]
      %v546 = vld [vmem:[%s4 + $0x198] sm:$0xff]
      %v547 = vld [vmem:[%s4 + $0x1a0] sm:$0xff]
      %v548 = vld [vmem:[%s4 + $0x1a8] sm:$0xff]
      %v549 = vld [vmem:[%s4 + $0x1b0] sm:$0xff]
      %v550 = vld [vmem:[%s4 + $0x1b8] sm:$0xff]
      %v551 = vld [vmem:[%s4 + $0x1c0] sm:$0xff]
      %v552 = vld [vmem:[%s4 + $0x1c8] sm:$0xff]
      %v553 = vld [vmem:[%s4 + $0x1d0] sm:$0xff]
      %v554 = vld [vmem:[%s4 + $0x1d8] sm:$0xff]
      %v555 = vld [vmem:[%s4 + $0x1e0] sm:$0xff]
      %v556 = vld [vmem:[%s4 + $0x1e8] sm:$0xff]
      %v557 = vld [vmem:[%s4 + $0x1f0] sm:$0xff]
      %v558 = vld [vmem:[%s4 + $0x1f8] sm:$0xff]
      %v559 = vld [vmem:[%s4 + $0x200] sm:$0xff]
      %v560 = vld [vmem:[%s4 + $0x208] sm:$0xff]
      %v561 = vld [vmem:[%s4 + $0x210] sm:$0xff]
      %v562 = vld [vmem:[%s4 + $0x218] sm:$0xff]
      %v563 = vld [vmem:[%s4 + $0x220] sm:$0xff]
      %v564 = vld [vmem:[%s4 + $0x228] sm:$0xff]
      %v565 = vld [vmem:[%s4 + $0x230] sm:$0xff]
      %v566 = vld [vmem:[%s4 + $0x238] sm:$0xff]
      %v567 = vld [vmem:[%s4 + $0x240] sm:$0xff]
      %v568 = vld [vmem:[%s4 + $0x248] sm:$0xff]
      %v569 = vld [vmem:[%s4 + $0x250] sm:$0xff]
      %v570 = vld [vmem:[%s4 + $0x258] sm:$0xff]
      %v571 = vld [vmem:[%s4 + $0x260] sm:$0xff]
      %v572 = vld [vmem:[%s4 + $0x268] sm:$0xff]
      %v573 = vld [vmem:[%s4 + $0x270] sm:$0xff]
      %v574 = vld [vmem:[%s4 + $0x278] sm:$0xff]
      %v575 = vld [vmem:[%s4 + $0x280] sm:$0xff]
      %v576 = vld [vmem:[%s4 + $0x288] sm:$0xff]
      %v577 = vld [vmem:[%s4 + $0x290] sm:$0xff]
      %v578 = vld [vmem:[%s4 + $0x298] sm:$0xff]
      %v579 = vld [vmem:[%s4 + $0x2a0] sm:$0xff]
      %v580 = vld [vmem:[%s4 + $0x2a8] sm:$0xff]
      %v581 = vld [vmem:[%s4 + $0x2b0] sm:$0xff]
      %v582 = vld [vmem:[%s4 + $0x2b8] sm:$0xff]
      %v583 = vld [vmem:[%s4 + $0x2c0] sm:$0xff]
      %v584 = vld [vmem:[%s4 + $0x2c8] sm:$0xff]
      %v585 = vld [vmem:[%s4 + $0x2d0] sm:$0xff]
      %v586 = vld [vmem:[%s4 + $0x2d8] sm:$0xff]
      %v587 = vld [vmem:[%s4 + $0x2e0] sm:$0xff]
      %v588 = vld [vmem:[%s4 + $0x2e8] sm:$0xff]
      %v589 = vld [vmem:[%s4 + $0x2f0] sm:$0xff]
      %v590 = vld [vmem:[%s4 + $0x2f8] sm:$0xff]
      %v591 = vld [vmem:[%s4 + $0x300] sm:$0xff]
      %v592 = vld [vmem:[%s4 + $0x308] sm:$0xff]
      %v593 = vld [vmem:[%s4 + $0x310] sm:$0xff]
      %v594 = vld [vmem:[%s4 + $0x318] sm:$0xff]
      %vm595 = vcmask 130048
      %v597 = vsel %vm595, %v494, 0
      %599 = vmatpush.msra.mxu0 %v525
      %600 = vmatpush.msra.mxu0 %v523
      %601 = vmatpush.msra.mxu0 %v521
      %602 = vmatpush.msra.mxu0 %v519
      %603 = vmatpush.msra.mxu0 %v517
      %604 = vmatpush.msra.mxu0 %v515
      %605 = vmatpush.msra.mxu0 %v513
      %606 = vmatpush.msra.mxu0 %v511
      %607 = vmatpush.msra.mxu0 %v509
      %608 = vmatpush.msra.mxu0 %v507
      %609 = vmatpush.msra.mxu0 %v505
      %610 = vmatpush.msra.mxu0 %v503
      %611 = vmatpush.msra.mxu0 %v501
      %612 = vmatpush.msra.mxu0 %v499
      %613 = vmatpush.msra.mxu0 %v497
      %614 = vmatpush.msra.mxu0 %v495
      %615 = vmatmul.f32.gmra.mxu0 %v491
      %v616 = vpop.f32.mrf.mxu0
      %v617 = vadd.f32 0.0, %v616
      %618 = vdwg.mxu0
      %619 = vmatpush.msra.mxu0 %v557
      %620 = vmatpush.msra.mxu0 %v555
      %621 = vmatpush.msra.mxu0 %v553
      %622 = vmatpush.msra.mxu0 %v551
      %623 = vmatpush.msra.mxu0 %v549
      %624 = vmatpush.msra.mxu0 %v547
      %625 = vmatpush.msra.mxu0 %v545
      %626 = vmatpush.msra.mxu0 %v543
      %627 = vmatpush.msra.mxu0 %v541
      %628 = vmatpush.msra.mxu0 %v539
      %629 = vmatpush.msra.mxu0 %v537
      %630 = vmatpush.msra.mxu0 %v535
      %631 = vmatpush.msra.mxu0 %v533
      %632 = vmatpush.msra.mxu0 %v531
      %633 = vmatpush.msra.mxu0 %v529
      %634 = vmatpush.msra.mxu0 %v527
      %635 = vmatmul.f32.gmra.mxu0 %v492
      %v636 = vpop.f32.mrf.mxu0
      %v637 = vadd.f32 %v617, %v636
      %638 = vdwg.mxu0
      %639 = vmatpush.msra.mxu0 %v589
      %640 = vmatpush.msra.mxu0 %v587
      %641 = vmatpush.msra.mxu0 %v585
      %642 = vmatpush.msra.mxu0 %v583
      %643 = vmatpush.msra.mxu0 %v581
      %644 = vmatpush.msra.mxu0 %v579
      %645 = vmatpush.msra.mxu0 %v577
      %646 = vmatpush.msra.mxu0 %v575
      %647 = vmatpush.msra.mxu0 %v573
      %648 = vmatpush.msra.mxu0 %v571
      %649 = vmatpush.msra.mxu0 %v569
      %650 = vmatpush.msra.mxu0 %v567
      %651 = vmatpush.msra.mxu0 %v565
      %652 = vmatpush.msra.mxu0 %v563
      %653 = vmatpush.msra.mxu0 %v561
      %654 = vmatpush.msra.mxu0 %v559
      %655 = vmatmul.f32.gmra.mxu0 %v493
      %v656 = vpop.f32.mrf.mxu0
      %v657 = vadd.f32 %v637, %v656
      %658 = vdwg.mxu0
      %659 = vmatpush.msra.mxu0 0.0
      %660 = vmatpush.msra.mxu0 0.0
      %661 = vmatpush.msra.mxu0 0.0
      %662 = vmatpush.msra.mxu0 0.0
      %663 = vmatpush.msra.mxu0 0.0
      %664 = vmatpush.msra.mxu0 0.0
      %665 = vmatpush.msra.mxu0 0.0
      %666 = vmatpush.msra.mxu0 0.0
      %667 = vmatpush.msra.mxu0 0.0
      %668 = vmatpush.msra.mxu0 0.0
      %669 = vmatpush.msra.mxu0 0.0
      %670 = vmatpush.msra.mxu0 0.0
      %671 = vmatpush.msra.mxu0 0.0
      %672 = vmatpush.msra.mxu0 0.0
      %673 = vmatpush.msra.mxu0 %v593
      %674 = vmatpush.msra.mxu0 %v591
      %675 = vmatmul.f32.gmra.mxu0 %v597
      %v676 = vpop.f32.mrf.mxu0
      %v677 = vadd.f32 %v657, %v676
      %678 = vdwg.mxu0
      %679 = vmatpush.msra.mxu0 %v526
      %680 = vmatpush.msra.mxu0 %v524
      %681 = vmatpush.msra.mxu0 %v522
      %682 = vmatpush.msra.mxu0 %v520
      %683 = vmatpush.msra.mxu0 %v518
      %684 = vmatpush.msra.mxu0 %v516
      %685 = vmatpush.msra.mxu0 %v514
      %686 = vmatpush.msra.mxu0 %v512
      %687 = vmatpush.msra.mxu0 %v510
      %688 = vmatpush.msra.mxu0 %v508
      %689 = vmatpush.msra.mxu0 %v506
      %690 = vmatpush.msra.mxu0 %v504
      %691 = vmatpush.msra.mxu0 %v502
      %692 = vmatpush.msra.mxu0 %v500
      %693 = vmatpush.msra.mxu0 %v498
      %694 = vmatpush.msra.mxu0 %v496
      %695 = vmatmul.f32.gmra.mxu0 %v491
      %v696 = vpop.f32.mrf.mxu0
      %v697 = vadd.f32 0.0, %v696
      %698 = vdwg.mxu0
      %699 = vmatpush.msra.mxu0 %v558
      %700 = vmatpush.msra.mxu0 %v556
      %701 = vmatpush.msra.mxu0 %v554
      %702 = vmatpush.msra.mxu0 %v552
      %703 = vmatpush.msra.mxu0 %v550
      %704 = vmatpush.msra.mxu0 %v548
      %705 = vmatpush.msra.mxu0 %v546
      %706 = vmatpush.msra.mxu0 %v544
      %707 = vmatpush.msra.mxu0 %v542
      %708 = vmatpush.msra.mxu0 %v540
      %709 = vmatpush.msra.mxu0 %v538
      %710 = vmatpush.msra.mxu0 %v536
      %711 = vmatpush.msra.mxu0 %v534
      %712 = vmatpush.msra.mxu0 %v532
      %713 = vmatpush.msra.mxu0 %v530
      %714 = vmatpush.msra.mxu0 %v528
      %715 = vmatmul.f32.gmra.mxu0 %v492
      %v716 = vpop.f32.mrf.mxu0
      %v717 = vadd.f32 %v697, %v716
      %718 = vdwg.mxu0
      %719 = vmatpush.msra.mxu0 %v590
      %720 = vmatpush.msra.mxu0 %v588
      %721 = vmatpush.msra.mxu0 %v586
      %722 = vmatpush.msra.mxu0 %v584
      %723 = vmatpush.msra.mxu0 %v582
      %724 = vmatpush.msra.mxu0 %v580
      %725 = vmatpush.msra.mxu0 %v578
      %726 = vmatpush.msra.mxu0 %v576
      %727 = vmatpush.msra.mxu0 %v574
      %728 = vmatpush.msra.mxu0 %v572
      %729 = vmatpush.msra.mxu0 %v570
      %730 = vmatpush.msra.mxu0 %v568
      %731 = vmatpush.msra.mxu0 %v566
      %732 = vmatpush.msra.mxu0 %v564
      %733 = vmatpush.msra.mxu0 %v562
      %734 = vmatpush.msra.mxu0 %v560
      %735 = vmatmul.f32.gmra.mxu0 %v493
      %v736 = vpop.f32.mrf.mxu0
      %v737 = vadd.f32 %v717, %v736
      %738 = vdwg.mxu0
      %739 = vmatpush.msra.mxu0 0.0
      %740 = vmatpush.msra.mxu0 0.0
      %741 = vmatpush.msra.mxu0 0.0
      %742 = vmatpush.msra.mxu0 0.0
      %743 = vmatpush.msra.mxu0 0.0
      %744 = vmatpush.msra.mxu0 0.0
      %745 = vmatpush.msra.mxu0 0.0
      %746 = vmatpush.msra.mxu0 0.0
      %747 = vmatpush.msra.mxu0 0.0
      %748 = vmatpush.msra.mxu0 0.0
      %749 = vmatpush.msra.mxu0 0.0
      %750 = vmatpush.msra.mxu0 0.0
      %751 = vmatpush.msra.mxu0 0.0
      %752 = vmatpush.msra.mxu0 0.0
      %753 = vmatpush.msra.mxu0 %v594
      %754 = vmatpush.msra.mxu0 %v592
      %755 = vmatmul.f32.gmra.mxu0 %v597
      %v756 = vpop.f32.mrf.mxu0
      %v757 = vadd.f32 %v737, %v756
      %758 = vdwg.mxu0
      %v759 = vld [vmem:[%s5] sm:$0xff]
      %v760 = vld [vmem:[%s5 + $0x8] sm:$0xff]
      %v761 = vld [vmem:[%s5 + $0x10] sm:$0xff]
      %v762 = vld [vmem:[%s5 + $0x18] sm:$0xff]
      %v763 = vld [vmem:[%s5 + $0x20] sm:$0xff]
      %v764 = vld [vmem:[%s5 + $0x28] sm:$0xff]
      %v765 = vld [vmem:[%s5 + $0x30] sm:$0xff]
      %v766 = vld [vmem:[%s5 + $0x38] sm:$0xff]
      %v767 = vld [vmem:[%s5 + $0x40] sm:$0xff]
      %v768 = vld [vmem:[%s5 + $0x48] sm:$0xff]
      %v769 = vld [vmem:[%s5 + $0x50] sm:$0xff]
      %v770 = vld [vmem:[%s5 + $0x58] sm:$0xff]
      %v771 = vld [vmem:[%s5 + $0x60] sm:$0xff]
      %v772 = vld [vmem:[%s5 + $0x68] sm:$0xff]
      %v773 = vld [vmem:[%s5 + $0x70] sm:$0xff]
      %v774 = vld [vmem:[%s5 + $0x78] sm:$0xff]
      %v775 = vld [vmem:[%s5 + $0x80] sm:$0xff]
      %v776 = vld [vmem:[%s5 + $0x88] sm:$0xff]
      %v777 = vld [vmem:[%s5 + $0x90] sm:$0xff]
      %v778 = vld [vmem:[%s5 + $0x98] sm:$0xff]
      %v779 = vld [vmem:[%s5 + $0xa0] sm:$0xff]
      %v780 = vld [vmem:[%s5 + $0xa8] sm:$0xff]
      %v781 = vld [vmem:[%s5 + $0xb0] sm:$0xff]
      %v782 = vld [vmem:[%s5 + $0xb8] sm:$0xff]
      %v783 = vld [vmem:[%s5 + $0xc0] sm:$0xff]
      %v784 = vld [vmem:[%s5 + $0xc8] sm:$0xff]
      %v785 = vld [vmem:[%s5 + $0xd0] sm:$0xff]
      %v786 = vld [vmem:[%s5 + $0xd8] sm:$0xff]
      %v787 = vld [vmem:[%s5 + $0xe0] sm:$0xff]
      %v788 = vld [vmem:[%s5 + $0xe8] sm:$0xff]
      %v789 = vld [vmem:[%s5 + $0xf0] sm:$0xff]
      %v790 = vld [vmem:[%s5 + $0xf8] sm:$0xff]
      %791 = vmatpush.msra.mxu0 %v774
      %792 = vmatpush.msra.mxu0 %v773
      %793 = vmatpush.msra.mxu0 %v772
      %794 = vmatpush.msra.mxu0 %v771
      %795 = vmatpush.msra.mxu0 %v770
      %796 = vmatpush.msra.mxu0 %v769
      %797 = vmatpush.msra.mxu0 %v768
      %798 = vmatpush.msra.mxu0 %v767
      %799 = vmatpush.msra.mxu0 %v766
      %800 = vmatpush.msra.mxu0 %v765
      %801 = vmatpush.msra.mxu0 %v764
      %802 = vmatpush.msra.mxu0 %v763
      %803 = vmatpush.msra.mxu0 %v762
      %804 = vmatpush.msra.mxu0 %v761
      %805 = vmatpush.msra.mxu0 %v760
      %806 = vmatpush.msra.mxu0 %v759
      %807 = vmatmul.f32.gmra.mxu0 %v677
      %v808 = vpop.f32.mrf.mxu0
      %v809 = vadd.f32 0.0, %v808
      %810 = vdwg.mxu0
      %811 = vmatpush.msra.mxu0 %v790
      %812 = vmatpush.msra.mxu0 %v789
      %813 = vmatpush.msra.mxu0 %v788
      %814 = vmatpush.msra.mxu0 %v787
      %815 = vmatpush.msra.mxu0 %v786
      %816 = vmatpush.msra.mxu0 %v785
      %817 = vmatpush.msra.mxu0 %v784
      %818 = vmatpush.msra.mxu0 %v783
      %819 = vmatpush.msra.mxu0 %v782
      %820 = vmatpush.msra.mxu0 %v781
      %821 = vmatpush.msra.mxu0 %v780
      %822 = vmatpush.msra.mxu0 %v779
      %823 = vmatpush.msra.mxu0 %v778
      %824 = vmatpush.msra.mxu0 %v777
      %825 = vmatpush.msra.mxu0 %v776
      %826 = vmatpush.msra.mxu0 %v775
      %827 = vmatmul.f32.gmra.mxu0 %v757
      %v828 = vpop.f32.mrf.mxu0
      %v829 = vadd.f32 %v809, %v828
      %830 = vdwg.mxu0
      %v831 = vtanh.pop %v829
      %v832 = vlaneseq
      %v833 = vand.u32 %v832, 127
      %v834 = vld [vmem:[%s374] sm:$0xff]
      %835 = vset.pattern.permute.xlu0 0
      %836 = vperm.xlu0 %835, %v834
      %v837 = vpop.permute.xlu0 %836
      %vm838 = vcmp.lt.s32.totalorder %v833, %v837
      %v839 = vsel %vm389, %v831, -inf
      %840 = vmax.xlane.f32.xlu0 %v839
      %v841 = vpop.xlane.xlu0 %840
      %v842 = vsub.f32 %v831, %v841
      %v843 = vmul.f32 %v842, 1.442695
      %v844 = vpow.pop %v843
      %v845 = vsel %vm838, %v844, 0.0
      %v846 = vsel %vm389, %v845, 0.0
      %847 = vadd.xlane.f32.xlu0 %v846
      %v848 = vpop.xlane.xlu0 %847
      %v849 = vmax.f32 %v848, 1e-30
      %v850 = vrcp.pop %v849
      %v851 = vmul.f32 %v849, %v850
      %v852 = vsub.f32 1.0, %v851
      %v853 = vmul.f32 %v850, %v852
      %v854 = vadd.f32 %v850, %v853
      %vm855 = vweird.f32 %v849
      %vm856 = vweird.f32 %v850
      %vm857 = vmor %vm855, %vm856
      %v858 = vsel %vm857, %v850, %v854
      %v859 = vand.u32 2147483647, %v849
      %vm860 = vcmp.eq.f32.partialorder %v859, 8.507059e+37
      %v861 = vand.u32 %v849, 2147483648
      %v862 = vor.u32 1.1754944e-38, %v861
      %v863 = vsel %vm860, %v862, %v858
      %v864 = vmul.f32 %v845, %v863
      %865 = vst.msk [vmem:[%s382] sm:$0xff] %vm389, %v864
      %v866 = vld [vmem:[%s6] sm:$0xff]
      %v867 = vld [vmem:[%s6 + $0x8] sm:$0xff]
      %v869 = vsel %vm389, %v864, 0
      %871 = vmatpush.msra.mxu0 0.0
      %872 = vmatpush.msra.mxu0 0.0
      %873 = vmatpush.msra.mxu0 0.0
      %874 = vmatpush.msra.mxu0 0.0
      %875 = vmatpush.msra.mxu0 0.0
      %876 = vmatpush.msra.mxu0 0.0
      %877 = vmatpush.msra.mxu0 0.0
      %878 = vmatpush.msra.mxu0 0.0
      %879 = vmatpush.msra.mxu0 0.0
      %880 = vmatpush.msra.mxu0 0.0
      %881 = vmatpush.msra.mxu0 0.0
      %882 = vmatpush.msra.mxu0 0.0
      %883 = vmatpush.msra.mxu0 0.0
      %884 = vmatpush.msra.mxu0 0.0
      %885 = vmatpush.msra.mxu0 0.0
      %886 = vmatpush.msra.mxu0 %v866
      %887 = vmatmul.f32.gmra.mxu0 %v869
      %v888 = vpop.f32.mrf.mxu0
      %v889 = vadd.f32 0.0, %v888
      %890 = vdwg.mxu0
      %891 = vmatpush.msra.mxu0 0.0
      %892 = vmatpush.msra.mxu0 0.0
      %893 = vmatpush.msra.mxu0 0.0
      %894 = vmatpush.msra.mxu0 0.0
      %895 = vmatpush.msra.mxu0 0.0
      %896 = vmatpush.msra.mxu0 0.0
      %897 = vmatpush.msra.mxu0 0.0
      %898 = vmatpush.msra.mxu0 0.0
      %899 = vmatpush.msra.mxu0 0.0
      %900 = vmatpush.msra.mxu0 0.0
      %901 = vmatpush.msra.mxu0 0.0
      %902 = vmatpush.msra.mxu0 0.0
      %903 = vmatpush.msra.mxu0 0.0
      %904 = vmatpush.msra.mxu0 0.0
      %905 = vmatpush.msra.mxu0 0.0
      %906 = vmatpush.msra.mxu0 %v867
      %907 = vmatmul.f32.gmra.mxu0 %v869
      %v908 = vpop.f32.mrf.mxu0
      %v909 = vadd.f32 0.0, %v908
      %910 = vdwg.mxu0
      %v911 = vmul.f32 %v677, %v889
      %v912 = vmul.f32 %v757, %v909
      %v913 = vld [vmem:[%s7] sm:$0xff]
      %v914 = vld [vmem:[%s7 + $0x8] sm:$0xff]
      %v915 = vld [vmem:[%s7 + $0x10] sm:$0xff]
      %v916 = vld [vmem:[%s7 + $0x18] sm:$0xff]
      %v917 = vld [vmem:[%s7 + $0x20] sm:$0xff]
      %v918 = vld [vmem:[%s7 + $0x28] sm:$0xff]
      %v919 = vld [vmem:[%s7 + $0x30] sm:$0xff]
      %v920 = vld [vmem:[%s7 + $0x38] sm:$0xff]
      %v921 = vld [vmem:[%s7 + $0x40] sm:$0xff]
      %v922 = vld [vmem:[%s7 + $0x48] sm:$0xff]
      %v923 = vld [vmem:[%s7 + $0x50] sm:$0xff]
      %v924 = vld [vmem:[%s7 + $0x58] sm:$0xff]
      %v925 = vld [vmem:[%s7 + $0x60] sm:$0xff]
      %v926 = vld [vmem:[%s7 + $0x68] sm:$0xff]
      %v927 = vld [vmem:[%s7 + $0x70] sm:$0xff]
      %v928 = vld [vmem:[%s7 + $0x78] sm:$0xff]
      %v929 = vld [vmem:[%s7 + $0x80] sm:$0xff]
      %v930 = vld [vmem:[%s7 + $0x88] sm:$0xff]
      %v931 = vld [vmem:[%s7 + $0x90] sm:$0xff]
      %v932 = vld [vmem:[%s7 + $0x98] sm:$0xff]
      %v933 = vld [vmem:[%s7 + $0xa0] sm:$0xff]
      %v934 = vld [vmem:[%s7 + $0xa8] sm:$0xff]
      %v935 = vld [vmem:[%s7 + $0xb0] sm:$0xff]
      %v936 = vld [vmem:[%s7 + $0xb8] sm:$0xff]
      %v937 = vld [vmem:[%s7 + $0xc0] sm:$0xff]
      %v938 = vld [vmem:[%s7 + $0xc8] sm:$0xff]
      %v939 = vld [vmem:[%s7 + $0xd0] sm:$0xff]
      %v940 = vld [vmem:[%s7 + $0xd8] sm:$0xff]
      %v941 = vld [vmem:[%s7 + $0xe0] sm:$0xff]
      %v942 = vld [vmem:[%s7 + $0xe8] sm:$0xff]
      %v943 = vld [vmem:[%s7 + $0xf0] sm:$0xff]
      %v944 = vld [vmem:[%s7 + $0xf8] sm:$0xff]
      %v945 = vld [vmem:[%s8] sm:$0x1]
      %v947 = vperm.slane %v945, 0
      %949 = vmatpush.msra.mxu0 %v928
      %950 = vmatpush.msra.mxu0 %v927
      %951 = vmatpush.msra.mxu0 %v926
      %952 = vmatpush.msra.mxu0 %v925
      %953 = vmatpush.msra.mxu0 %v924
      %954 = vmatpush.msra.mxu0 %v923
      %955 = vmatpush.msra.mxu0 %v922
      %956 = vmatpush.msra.mxu0 %v921
      %957 = vmatpush.msra.mxu0 %v920
      %958 = vmatpush.msra.mxu0 %v919
      %959 = vmatpush.msra.mxu0 %v918
      %960 = vmatpush.msra.mxu0 %v917
      %961 = vmatpush.msra.mxu0 %v916
      %962 = vmatpush.msra.mxu0 %v915
      %963 = vmatpush.msra.mxu0 %v914
      %964 = vmatpush.msra.mxu0 %v913
      %965 = vmatmul.f32.gmra.mxu0 %v911
      %v966 = vpop.f32.mrf.mxu0
      %v967 = vadd.f32 %v947, %v966
      %968 = vdwg.mxu0
      %969 = vmatpush.msra.mxu0 %v944
      %970 = vmatpush.msra.mxu0 %v943
      %971 = vmatpush.msra.mxu0 %v942
      %972 = vmatpush.msra.mxu0 %v941
      %973 = vmatpush.msra.mxu0 %v940
      %974 = vmatpush.msra.mxu0 %v939
      %975 = vmatpush.msra.mxu0 %v938
      %976 = vmatpush.msra.mxu0 %v937
      %977 = vmatpush.msra.mxu0 %v936
      %978 = vmatpush.msra.mxu0 %v935
      %979 = vmatpush.msra.mxu0 %v934
      %980 = vmatpush.msra.mxu0 %v933
      %981 = vmatpush.msra.mxu0 %v932
      %982 = vmatpush.msra.mxu0 %v931
      %983 = vmatpush.msra.mxu0 %v930
      %984 = vmatpush.msra.mxu0 %v929
      %985 = vmatmul.f32.gmra.mxu0 %v912
      %v986 = vpop.f32.mrf.mxu0
      %v987 = vadd.f32 %v967, %v986
      %988 = vdwg.mxu0
      %vm989 = vcmask 31744
      %990 = vst.msk [vmem:[%s378] sm:$0xff] %vm989, %v987
      %p991 = scmp.lt.s32.totalorder %s22, 1
      %s992 = scalar_select %p991, %s22, 1
      %s993 = smul.addr %s992, 8
      %s994 = scalar_lea.vmem %s9, %s993
      %p995 = scmp.lt.s32.totalorder %s22, 1
      %s996 = scalar_select %p995, %s22, 1
      %s997 = smul.addr %s996, 8
      %s998 = scalar_lea.vmem %s10, %s997
      // Predicated region
      $region57: #{nn_attention_forward.1} parent=55 // pred_check
        %p999 = pneg %p239
      $region58: #{nn_attention_forward.1} parent=55 // pred_check_branch
        %1001 = sbr.rel (%p999) target = $region60
      $region59: #{nn_attention_forward.1} parent=55 // pred_region
        _
      $region60: #{nn_attention_forward.1} parent=55 // pred_fallthru
        _
      // Predicated region
      $region61: #{nn_attention_forward.1} parent=55 // pred_check
        %p1002 = pneg %p265
      $region62: #{nn_attention_forward.1} parent=55 // pred_check_branch
        %1004 = sbr.rel (%p1002) target = $region64
      $region63: #{nn_attention_forward.1} parent=55 // pred_region
        _
      $region64: #{nn_attention_forward.1} parent=55 // pred_fallthru
        _
    $region56: #{nn_attention_forward.1} parent=5 // pred_fallthru
      _
    %p1005 = scmp.le.s32.totalorder 2, %s17
    // Predicated region
    $region65: #{nn_attention_forward.1} parent=5 // pred_check
      %p1006 = pneg %p1005
    $region66: #{nn_attention_forward.1} parent=5 // pred_check_branch
      %1008 = sbr.rel (%p1006) target = $region68
    $region67: #{nn_attention_forward.1} parent=5 // pred_region
      %s1009 = ssub.s32 %s17, 2
      // Predicated region
      $region69: #{nn_attention_forward.1} parent=67 // pred_check
        %p1010 = pneg %p245
      $region70: #{nn_attention_forward.1} parent=67 // pred_check_branch
        %1012 = sbr.rel (%p1010) target = $region72
      $region71: #{nn_attention_forward.1} parent=67 // pred_region
        %p1013 = scmp.lt.s32.totalorder %s23, 1
        %s1014 = scalar_select %p1013, %s23, 1
        %s1015 = smul.addr %s1014, 8
        %s1016 = scalar_lea.vmem %s9, %s1015
      $region72: #{nn_attention_forward.1} parent=67 // pred_fallthru
        _
      // Predicated region
      $region73: #{nn_attention_forward.1} parent=67 // pred_check
        %p1017 = pneg %p271
      $region74: #{nn_attention_forward.1} parent=67 // pred_check_branch
        %1019 = sbr.rel (%p1017) target = $region76
      $region75: #{nn_attention_forward.1} parent=67 // pred_region
        %p1020 = scmp.lt.s32.totalorder %s23, 1
        %s1021 = scalar_select %p1020, %s23, 1
        %s1022 = smul.addr %s1021, 8
        %s1023 = scalar_lea.vmem %s10, %s1022
      $region76: #{nn_attention_forward.1} parent=67 // pred_fallthru
        _
    $region68: #{nn_attention_forward.1} parent=5 // pred_fallthru
      _
  $region6: #{nn_attention_forward.1} parent=0 // loop_footer
    %s21 = sadd.s32 1, %s17
  $region7: #{nn_attention_forward.1} parent=0 // loop_footer_branch
    %16 = sbr.rel target = $region3
  $region8: #{nn_attention_forward.1} parent=0 // loop_exit
    _

</llo_original>
